<compile_context>
chip_gen: v7x
topology: tpu7x:2x2x1
jax: 0.10.0
libtpu: 0.0.40
codegen_flags: <defaults>
</compile_context>

<pallas_src>
import functools

import jax
import jax.numpy as jnp
from jax.experimental import pallas as pl
from jax.experimental.pallas import tpu as pltpu


# ---------------------------------------------------------------------------
# Kernels
# ---------------------------------------------------------------------------

def gru_cell_kernel(x_ref, h_ref, w_cat_ref, u_cat_ref, b_cat_ref, out_ref, *,
                    hidden_pad):
    """Single GRU step. All gate blocks are Hp(=128)-lane aligned."""
    Hp = hidden_pad
    x = x_ref[...]
    h = h_ref[...]                                              # [B, Hp] (zero-padded)

    # Fused input projection + pre-summed biases: [B, 3*Hp]
    gx = jnp.dot(x, w_cat_ref[...], preferred_element_type=jnp.float32) + b_cat_ref[...]
    # Fused hidden projection for z and r: [B, 2*Hp]  (128-aligned ref slice)
    gh = jnp.dot(h, u_cat_ref[:, :2 * Hp], preferred_element_type=jnp.float32)

    z = jax.nn.sigmoid(gx[:, :Hp] + gh[:, :Hp])
    r = jax.nn.sigmoid(gx[:, Hp:2 * Hp] + gh[:, Hp:2 * Hp])

    # Candidate: reset applied BEFORE the Uh matmul (matches the original module).
    rh = r * h
    n = jnp.tanh(gx[:, 2 * Hp:] +
                 jnp.dot(rh, u_cat_ref[:, 2 * Hp:], preferred_element_type=jnp.float32))

    h_next = h + z * (n - h)
    out_ref[...] = h_next.astype(out_ref.dtype)


def gru_seq_kernel(gx_ref, h0_ref, u_cat_ref, out_ref, h_scratch, *, hidden_pad):
    """One timestep of the fused-recurrence kernel (grid axis = T, 'arbitrary').

    gx_ref carries the precomputed x-projection (+ biases) for this step; the
    hidden state is carried across grid iterations in VMEM scratch.
    """
    Hp = hidden_pad
    t = pl.program_id(0)

    @pl.when(t == 0)
    def _():
        h_scratch[...] = h0_ref[...].astype(jnp.float32)

    h = h_scratch[...]                                          # [B, Hp]
    gx = gx_ref[0]                                              # [B, 3*Hp]

    gh = jnp.dot(h, u_cat_ref[:, :2 * Hp], preferred_element_type=jnp.float32)
    z = jax.nn.sigmoid(gx[:, :Hp] + gh[:, :Hp])
    r = jax.nn.sigmoid(gx[:, Hp:2 * Hp] + gh[:, Hp:2 * Hp])

    rh = r * h
    n = jnp.tanh(gx[:, 2 * Hp:] +
                 jnp.dot(rh, u_cat_ref[:, 2 * Hp:], preferred_element_type=jnp.float32))

    h_next = h + z * (n - h)
    h_scratch[...] = h_next
    out_ref[0] = h_next.astype(out_ref.dtype)


# ---------------------------------------------------------------------------
# Wrappers
# ---------------------------------------------------------------------------

def gru_cell(x, h, fused):
    """One GRU cell step (matches the module's forward). `fused` from fuse_params()."""
    B, H = h.shape
    Hp = fused["U_cat"].shape[0]
    h_pad = jnp.pad(h, ((0, 0), (0, Hp - H)))
    vmem = pl.BlockSpec(memory_space=pltpu.MemorySpace.VMEM)
    out = pl.pallas_call(
        functools.partial(gru_cell_kernel, hidden_pad=Hp),
        out_shape=jax.ShapeDtypeStruct((B, Hp), x.dtype),
        in_specs=[vmem] * 5,
        out_specs=vmem,
    )(x, h_pad, fused["W_cat"], fused["U_cat"], fused["b_cat"])
    return out[:, :H]


def gru_sequence(xs, h0, fused):
    """Apply the GRU cell over a [T, B, I] sequence inside ONE pallas_call.

    The x-projection is hoisted & batched outside the recurrence; the kernel
    grid iterates over T with resident weights and h carried in VMEM scratch.
    """
    T, B, _ = xs.shape
    H = h0.shape[1]
    Hp = fused["U_cat"].shape[0]

    # Hoisted, batched input projection (no recurrence dependence): one big matmul.
    gx = jnp.einsum("tbi,ij->tbj", xs, fused["W_cat"],
                    preferred_element_type=jnp.float32) + fused["b_cat"]
    h0_pad = jnp.pad(h0, ((0, 0), (0, Hp - H)))

    hs_pad = pl.pallas_call(
        functools.partial(gru_seq_kernel, hidden_pad=Hp),
        out_shape=jax.ShapeDtypeStruct((T, B, Hp), xs.dtype),
        grid=(T,),
        in_specs=[
            pl.BlockSpec((1, B, 3 * Hp), lambda t: (t, 0, 0)),   # per-step gx block
            pl.BlockSpec((B, Hp), lambda t: (0, 0)),             # h0 (resident)
            pl.BlockSpec((Hp, 3 * Hp), lambda t: (0, 0)),        # U_cat (resident)
        ],
        out_specs=pl.BlockSpec((1, B, Hp), lambda t: (t, 0, 0)),  # lane-dense store
        scratch_shapes=[pltpu.VMEM((B, Hp), jnp.float32)],        # carried hidden state
        compiler_params=pltpu.CompilerParams(
            dimension_semantics=("arbitrary",)),                  # serial recurrence
    )(gx, h0_pad, fused["U_cat"])
    return hs_pad[:, :, :H]


# ---------------------------------------------------------------------------
# Parameters
# ---------------------------------------------------------------------------

def init_params(key, input_size, hidden_size, dtype=jnp.float32):
    """Per-gate nn.Linear-style init (uniform(-1/sqrt(fan_in), 1/sqrt(fan_in))).

    Weights are stored pre-transposed as [in, out] so v @ W == nn.Linear(v).
    """
    names = ["Wz", "Uz", "Wr", "Ur", "Wh", "Uh"]
    fan_in = {"Wz": input_size, "Wr": input_size, "Wh": input_size,
              "Uz": hidden_size, "Ur": hidden_size, "Uh": hidden_size}
    params = {}
    keys = jax.random.split(key, 2 * len(names))
    for i, name in enumerate(names):
        k_w, k_b = keys[2 * i], keys[2 * i + 1]
        bound = 1.0 / jnp.sqrt(jnp.asarray(fan_in[name], dtype))
        params[name] = jax.random.uniform(
            k_w, (fan_in[name], hidden_size), dtype, minval=-bound, maxval=bound)
        params["b" + name] = jax.random.uniform(
            k_b, (1, hidden_size), dtype, minval=-bound, maxval=bound)
    return params


def fuse_params(params):
    """One-time fusion + 128-lane padding of the gate dimension.

    W_cat [I, 3*Hp]  = [Wz | Wr | Wh]     (each gate in its own 128-lane tile)
    U_cat [Hp, 3*Hp] = [Uz | Ur | Uh]     (rows zero-padded H -> Hp)
    b_cat [1, 3*Hp]  = [bWz+bUz | bWr+bUr | bWh+bUh]
    """
    H = params["Uz"].shape[0]
    Hp = ((H + 127) // 128) * 128

    def pad_cols(w):                      # [K, H] -> [K, Hp]
        return jnp.pad(w, ((0, 0), (0, Hp - H)))

    def pad_full(u):                      # [H, H] -> [Hp, Hp]
        return jnp.pad(u, ((0, Hp - H), (0, Hp - H)))

    W_cat = jnp.concatenate(
        [pad_cols(params["Wz"]), pad_cols(params["Wr"]), pad_cols(params["Wh"])], axis=1)
    U_cat = jnp.concatenate(
        [pad_full(params["Uz"]), pad_full(params["Ur"]), pad_full(params["Uh"])], axis=1)
    b_cat = jnp.concatenate(
        [pad_cols(params["bWz"] + params["bUz"]),
         pad_cols(params["bWr"] + params["bUr"]),
         pad_cols(params["bWh"] + params["bUh"])], axis=1)
    return {"W_cat": W_cat, "U_cat": U_cat, "b_cat": b_cat}


# ---------------------------------------------------------------------------
# Pure-JAX reference
# ---------------------------------------------------------------------------

def gru_cell_ref(x, h, params):
    def lin(v, w, b):
        return v @ w + b
    z = jax.nn.sigmoid(lin(x, params["Wz"], params["bWz"]) + lin(h, params["Uz"], params["bUz"]))
    r = jax.nn.sigmoid(lin(x, params["Wr"], params["bWr"]) + lin(h, params["Ur"], params["bUr"]))
    h_tilde = jnp.tanh(lin(x, params["Wh"], params["bWh"]) + lin(r * h, params["Uh"], params["bUh"]))
    return (1.0 - z) * h + z * h_tilde


if __name__ == "__main__":
    B, INPUT_SIZE, HIDDEN_SIZE, T = 8, 16, 32, 8

    key = jax.random.PRNGKey(0)
    k_x, k_h, k_p, k_seq = jax.random.split(key, 4)
    x = jax.random.normal(k_x, (B, INPUT_SIZE), jnp.float32)
    h = jax.random.normal(k_h, (B, HIDDEN_SIZE), jnp.float32)
    params = init_params(k_p, INPUT_SIZE, HIDDEN_SIZE)
    fused = fuse_params(params)

    # 1) Single cell step (exact module forward).
    h_next = gru_cell(x, h, fused)
    jax.block_until_ready(h_next)
    h_next_ref = gru_cell_ref(x, h, params)
    assert h_next.shape == (B, HIDDEN_SIZE)
    assert jnp.allclose(h_next, h_next_ref, atol=1e-5, rtol=1e-5)

    # 2) Full recurrence fused into one pallas_call.
    xs = jax.random.normal(k_seq, (T, B, INPUT_SIZE), jnp.float32)
    hs = gru_sequence(xs, h, fused)
    jax.block_until_ready(hs)

    h_r = h
    hs_ref = []
    for t in range(T):
        h_r = gru_cell_ref(xs[t], h_r, params)
        hs_ref.append(h_r)
    hs_ref = jnp.stack(hs_ref)
    assert hs.shape == (T, B, HIDDEN_SIZE)
    assert jnp.allclose(hs, hs_ref, atol=2e-4, rtol=2e-4)

    print("KERNEL_OK")
</pallas_src>

<mosaic_0001>
module attributes {stable_mosaic.version = 11 : i64} {
  func.func @gru_cell_kernel(%arg0: memref<8x16xf32, #tpu.memory_space<vmem>>, %arg1: memref<8x128xf32, #tpu.memory_space<vmem>>, %arg2: memref<16x384xf32, #tpu.memory_space<vmem>>, %arg3: memref<128x384xf32, #tpu.memory_space<vmem>>, %arg4: memref<1x384xf32, #tpu.memory_space<vmem>>, %arg5: memref<8x128xf32, #tpu.memory_space<vmem>>) attributes {dimension_semantics = [], scalar_prefetch = 0 : i64, scratch_operands = 0 : i64, tpu.core_type = #tpu.core_type<tc>} {
    %c0 = arith.constant 0 : index
    %c0_0 = arith.constant 0 : index
    %0 = vector.load %arg0[%c0, %c0_0] : memref<8x16xf32, #tpu.memory_space<vmem>>, vector<8x16xf32>
    %c0_1 = arith.constant 0 : index
    %c0_2 = arith.constant 0 : index
    %1 = vector.load %arg1[%c0_1, %c0_2] : memref<8x128xf32, #tpu.memory_space<vmem>>, vector<8x128xf32>
    %c0_3 = arith.constant 0 : index
    %c0_4 = arith.constant 0 : index
    %2 = vector.load %arg2[%c0_3, %c0_4] : memref<16x384xf32, #tpu.memory_space<vmem>>, vector<16x384xf32>
    %cst = arith.constant dense<0.000000e+00> : vector<8x384xf32>
    %3 = tpu.matmul %0, %2, %cst {dimension_numbers = #tpu.dot_dimension_numbers<[1], [0], [0], [1], [0, 0, 1, 1], [], []>} : vector<8x16xf32>, vector<16x384xf32>, vector<8x384xf32> -> vector<8x384xf32>
    %c0_5 = arith.constant 0 : index
    %c0_6 = arith.constant 0 : index
    %4 = vector.load %arg4[%c0_5, %c0_6] : memref<1x384xf32, #tpu.memory_space<vmem>>, vector<1x384xf32>
    %5 = vector.broadcast %4 : vector<1x384xf32> to vector<8x384xf32>
    %6 = arith.addf %3, %5 : vector<8x384xf32>
    %c0_7 = arith.constant 0 : index
    %c0_8 = arith.constant 0 : index
    %7 = vector.load %arg3[%c0_7, %c0_8] : memref<128x384xf32, #tpu.memory_space<vmem>>, vector<128x256xf32>
    %cst_9 = arith.constant dense<0.000000e+00> : vector<8x256xf32>
    %8 = tpu.matmul %1, %7, %cst_9 {dimension_numbers = #tpu.dot_dimension_numbers<[1], [0], [0], [1], [0, 0, 1, 1], [], []>} : vector<8x128xf32>, vector<128x256xf32>, vector<8x256xf32> -> vector<8x256xf32>
    %9 = vector.extract_strided_slice %6 {offsets = [0, 0], sizes = [8, 128], strides = [1, 1]} : vector<8x384xf32> to vector<8x128xf32>
    %10 = vector.extract_strided_slice %8 {offsets = [0, 0], sizes = [8, 128], strides = [1, 1]} : vector<8x256xf32> to vector<8x128xf32>
    %11 = arith.addf %9, %10 : vector<8x128xf32>
    %12 = arith.negf %11 : vector<8x128xf32>
    %13 = math.exp %12 : vector<8x128xf32>
    %cst_10 = arith.constant 1.000000e+00 : f32
    %14 = vector.broadcast %cst_10 : f32 to vector<8x128xf32>
    %15 = arith.addf %14, %13 : vector<8x128xf32>
    %16 = arith.divf %14, %15 : vector<8x128xf32>
    %17 = vector.extract_strided_slice %6 {offsets = [0, 128], sizes = [8, 128], strides = [1, 1]} : vector<8x384xf32> to vector<8x128xf32>
    %18 = vector.extract_strided_slice %8 {offsets = [0, 128], sizes = [8, 128], strides = [1, 1]} : vector<8x256xf32> to vector<8x128xf32>
    %19 = arith.addf %17, %18 : vector<8x128xf32>
    %20 = arith.negf %19 : vector<8x128xf32>
    %21 = math.exp %20 : vector<8x128xf32>
    %cst_11 = arith.constant 1.000000e+00 : f32
    %22 = vector.broadcast %cst_11 : f32 to vector<8x128xf32>
    %23 = arith.addf %22, %21 : vector<8x128xf32>
    %24 = arith.divf %22, %23 : vector<8x128xf32>
    %25 = arith.mulf %24, %1 : vector<8x128xf32>
    %26 = vector.extract_strided_slice %6 {offsets = [0, 256], sizes = [8, 128], strides = [1, 1]} : vector<8x384xf32> to vector<8x128xf32>
    %c0_12 = arith.constant 0 : index
    %c256 = arith.constant 256 : index
    %27 = vector.load %arg3[%c0_12, %c256] : memref<128x384xf32, #tpu.memory_space<vmem>>, vector<128x128xf32>
    %cst_13 = arith.constant dense<0.000000e+00> : vector<8x128xf32>
    %28 = tpu.matmul %25, %27, %cst_13 {dimension_numbers = #tpu.dot_dimension_numbers<[1], [0], [0], [1], [0, 0, 1, 1], [], []>} : vector<8x128xf32>, vector<128x128xf32>, vector<8x128xf32> -> vector<8x128xf32>
    %29 = arith.addf %26, %28 : vector<8x128xf32>
    %30 = math.tanh %29 : vector<8x128xf32>
    %31 = arith.subf %30, %1 : vector<8x128xf32>
    %32 = arith.mulf %16, %31 : vector<8x128xf32>
    %33 = arith.addf %1, %32 : vector<8x128xf32>
    %c0_14 = arith.constant 0 : index
    %c0_15 = arith.constant 0 : index
    %34 = vector.load %arg5[%c0_14, %c0_15] : memref<8x128xf32, #tpu.memory_space<vmem>>, vector<8x128xf32>
    tpu.vector_store %arg5[%c0_14, %c0_15], %33 {strides = array<i32>} : memref<8x128xf32, #tpu.memory_space<vmem>>, vector<8x128xf32>,
    return
  }
}

</mosaic_0001>

<llo_original>
// kernel: tpu_custom_call.1
$region0: #{tpu_custom_call.1}
  #allocation0 [shape = 'u32[]', space=smem, size = 0x4, offset = 0x4, fixed_abs, tag = 'smem constant byte address 0x4 - core index']
  #allocation1 [shape = 'u32[144,128]{1,0:T(1,128)}', space=vmem, size = 0x12000, scoped, tag = 'internal scratch']
  %s0 = inlined_call_operand.hbm [shape: f32[8,16], index: 0, kind: input, shape index: {}]
  %s1 = inlined_call_operand.hbm [shape: f32[8,128], index: 1, kind: input, shape index: {}]
  %s2 = inlined_call_operand.hbm [shape: f32[16,384], index: 2, kind: input, shape index: {}]
  %s3 = inlined_call_operand.hbm [shape: f32[128,384], index: 3, kind: input, shape index: {}]
  %s4 = inlined_call_operand.vmem [shape: f32[1,384], index: 4, kind: input, shape index: {}]
  %s5 = inlined_call_operand.hbm [shape: f32[8,128], index: 5, kind: output, shape index: {}]
  %s6 = sld [smem:[#allocation0]]
  $region46: #{tpu_custom_call.1} parent=0
    _
  %s8 = ssub.s32 1, %s6
  %s9 = scalar_select 0, %s8, %s6
  $region1: #{tpu_custom_call.1} parent=0
    #allocation2 [shape = 'u8[4096]{0}', space=vmem, size = 0x1000, scoped, tag = 'input window, operand 0, single buffered']
    #allocation3 [shape = 's32[1]{0}', space=sflag, size = 0x4, scoped, tag = 'scoped memory for tpu_custom_call.1']
    #allocation4 [shape = 's32[1]{0}', space=sflag, size = 0x4, scoped, tag = 'scoped memory for tpu_custom_call.1']
    #allocation5 [shape = 'u8[4096]{0}', space=vmem, size = 0x1000, scoped, tag = 'input window, operand 1, single buffered']
    #allocation6 [shape = 's32[1]{0}', space=sflag, size = 0x4, scoped, tag = 'scoped memory for tpu_custom_call.1']
    #allocation7 [shape = 'u8[24576]{0}', space=vmem, size = 0x6000, scoped, tag = 'input window, operand 2, single buffered']
    #allocation8 [shape = 'u8[196608]{0}', space=vmem, size = 0x30000, scoped, tag = 'input window, operand 3, single buffered']
    #allocation9 [shape = 's32[1]{0}', space=sflag, size = 0x4, scoped, tag = 'scoped memory for tpu_custom_call.1']
    #allocation10 [shape = 'u8[4096]{0}', space=vmem, size = 0x1000, scoped, tag = 'output window, operand 0, single buffered']
    %10 = vsyncpa [#allocation3], 0
    %11 = vsyncpa [#allocation6], 0
    %12 = vsyncpa [#allocation9], 0
    %13 = vsyncpa [#allocation4], 0
    // Predicated region
    $region2: #{tpu_custom_call.1} parent=1 // pred_check
      _
    $region3: #{tpu_custom_call.1} parent=1 // pred_check_branch
      %15 = sbr.rel (0) target = $region5
    $region4: #{tpu_custom_call.1} parent=1 // pred_region
      %s17 = ssub.s32 128, 128
      %18 = vsyncadd [#allocation3], %s17
      %s20 = sshll.u32 [#allocation2], 4
      %s21 = int_to_ptr.vmem [resolvable:$true] %s20
      %23 = dma.hbm_to_vmem [thread:$0]  %s0, 128, %s21, [#allocation3]
    $region5: #{tpu_custom_call.1} parent=1 // pred_fallthru
      _
    // Predicated region
    $region6: #{tpu_custom_call.1} parent=1 // pred_check
      _
    $region7: #{tpu_custom_call.1} parent=1 // pred_check_branch
      %25 = sbr.rel (0) target = $region9
    $region8: #{tpu_custom_call.1} parent=1 // pred_region
      %s27 = ssub.s32 128, 128
      %28 = vsyncadd [#allocation6], %s27
      %s30 = sshll.u32 [#allocation5], 4
      %s31 = int_to_ptr.vmem [resolvable:$true] %s30
      %33 = dma.hbm_to_vmem [thread:$0]  %s1, 128, %s31, [#allocation6]
    $region9: #{tpu_custom_call.1} parent=1 // pred_fallthru
      _
    // Predicated region
    $region10: #{tpu_custom_call.1} parent=1 // pred_check
      _
    $region11: #{tpu_custom_call.1} parent=1 // pred_check_branch
      %35 = sbr.rel (0) target = $region13
    $region12: #{tpu_custom_call.1} parent=1 // pred_region
      %s37 = ssub.s32 768, 768
      %38 = vsyncadd [#allocation6], %s37
      %s39 = sshll.u32 [#allocation7], 4
      %s40 = int_to_ptr.vmem [resolvable:$true] %s39
      %45 = dma.hbm_to_vmem [thread:$0]  %s2, 768, %s40, [#allocation6], 384, 384, 24
    $region13: #{tpu_custom_call.1} parent=1 // pred_fallthru
      _
    // Predicated region
    $region14: #{tpu_custom_call.1} parent=1 // pred_check
      _
    $region15: #{tpu_custom_call.1} parent=1 // pred_check_branch
      %47 = sbr.rel (0) target = $region17
    $region16: #{tpu_custom_call.1} parent=1 // pred_region
      %s49 = ssub.s32 6144, 6144
      %50 = vsyncadd [#allocation9], %s49
      %s51 = sshll.u32 [#allocation8], 4
      %s52 = int_to_ptr.vmem [resolvable:$true] %s51
      %57 = dma.hbm_to_vmem [thread:$0]  %s3, 6144, %s52, [#allocation9], 384, 384, 24
    $region17: #{tpu_custom_call.1} parent=1 // pred_fallthru
      _
    // Predicated region
    $region18: #{tpu_custom_call.1} parent=1 // pred_check
      _
    $region19: #{tpu_custom_call.1} parent=1 // pred_check_branch
      %59 = sbr.rel (0) target = $region21
    $region20: #{tpu_custom_call.1} parent=1 // pred_region
      _
    $region21: #{tpu_custom_call.1} parent=1 // pred_fallthru
      _
    // Predicated region
    $region22: #{tpu_custom_call.1} parent=1 // pred_check
      _
    $region23: #{tpu_custom_call.1} parent=1 // pred_check_branch
      %61 = sbr.rel (0) target = $region25
    $region24: #{tpu_custom_call.1} parent=1 // pred_region
      %62 = dma.done [#allocation3], 128
    $region25: #{tpu_custom_call.1} parent=1 // pred_fallthru
      _
    // Predicated region
    $region26: #{tpu_custom_call.1} parent=1 // pred_check
      _
    $region27: #{tpu_custom_call.1} parent=1 // pred_check_branch
      %64 = sbr.rel (0) target = $region29
    $region28: #{tpu_custom_call.1} parent=1 // pred_region
      %65 = dma.done [#allocation6], 128
    $region29: #{tpu_custom_call.1} parent=1 // pred_fallthru
      _
    // Predicated region
    $region30: #{tpu_custom_call.1} parent=1 // pred_check
      _
    $region31: #{tpu_custom_call.1} parent=1 // pred_check_branch
      %67 = sbr.rel (0) target = $region33
    $region32: #{tpu_custom_call.1} parent=1 // pred_region
      %68 = dma.done [#allocation6], 768
    $region33: #{tpu_custom_call.1} parent=1 // pred_fallthru
      _
    // Predicated region
    $region34: #{tpu_custom_call.1} parent=1 // pred_check
      _
    $region35: #{tpu_custom_call.1} parent=1 // pred_check_branch
      %70 = sbr.rel (0) target = $region37
    $region36: #{tpu_custom_call.1} parent=1 // pred_region
      %71 = dma.done [#allocation9], 6144
    $region37: #{tpu_custom_call.1} parent=1 // pred_fallthru
      _
    %v72 = vld [vmem:[#allocation2] sm:$0xff]
    %v73 = vld [vmem:[#allocation5] sm:$0xff]
    %v74 = vld [vmem:[#allocation7] sm:$0xff]
    %v75 = vld [vmem:[#allocation7 + $0x8] sm:$0xff]
    %v76 = vld [vmem:[#allocation7 + $0x10] sm:$0xff]
    %v77 = vld [vmem:[#allocation7 + $0x18] sm:$0xff]
    %v78 = vld [vmem:[#allocation7 + $0x20] sm:$0xff]
    %v79 = vld [vmem:[#allocation7 + $0x28] sm:$0xff]
    %v80 = vld [vmem:[%s4] sm:$0x7]
    %v82 = vlaneseq
    %v83 = vshrl.u32 %v82, 7
    %v84 = vsub.s32 0, %v83
    %v85 = vrot.slane %v80, %v84
    %v86 = vlaneseq
    %v87 = vshrl.u32 %v86, 7
    %v88 = vsub.s32 1, %v87
    %v89 = vrot.slane %v80, %v88
    %v90 = vlaneseq
    %v91 = vshrl.u32 %v90, 7
    %v92 = vsub.s32 2, %v91
    %v93 = vrot.slane %v80, %v92
    %vm97 = vcmask 130048
    %v99 = vsel %vm97, %v72, 0
    %101 = vmatprep.subr.mxu0 %v75
    %102 = vmatpush1.msra.mxu0 %v74
    %103 = vmatprep.subr.mxu0 %v78
    %104 = vmatpush1.msra.mxu0 %v77
    %105 = vmatprep.subr.mxu0 0.0
    %106 = vmatpush1.msra.mxu0 0.0
    %107 = vmatprep.subr.mxu0 0.0
    %108 = vmatpush1.msra.mxu0 0.0
    %109 = vmatprep.subr.mxu0 0.0
    %110 = vmatpush1.msra.mxu0 0.0
    %111 = vmatprep.subr.mxu0 0.0
    %112 = vmatpush1.msra.mxu0 0.0
    %113 = vmatprep.subr.mxu0 0.0
    %114 = vmatpush1.msra.mxu0 0.0
    %115 = vmatprep.subr.mxu0 0.0
    %116 = vmatpush1.msra.mxu0 0.0
    %117 = vmatprep.subr.mxu0 0.0
    %118 = vmatpush1.msra.mxu0 0.0
    %119 = vmatprep.subr.mxu0 0.0
    %120 = vmatpush1.msra.mxu0 0.0
    %121 = vmatprep.subr.mxu0 0.0
    %122 = vmatpush1.msra.mxu0 0.0
    %123 = vmatprep.subr.mxu0 0.0
    %124 = vmatpush1.msra.mxu0 0.0
    %125 = vmatprep.subr.mxu0 0.0
    %126 = vmatpush1.msra.mxu0 0.0
    %127 = vmatprep.subr.mxu0 0.0
    %128 = vmatpush1.msra.mxu0 0.0
    %129 = vmatprep.subr.mxu0 0.0
    %130 = vmatpush1.msra.mxu0 0.0
    %131 = vmatprep.subr.mxu0 0.0
    %132 = vmatpush1.msra.mxu0 0.0
    %133 = vmatprep.subr.mxu0 0.0
    %134 = vmatpush1.msra.mxu0 0.0
    %135 = vmatprep.subr.mxu0 0.0
    %136 = vmatpush1.msra.mxu0 0.0
    %137 = vmatprep.subr.mxu0 0.0
    %138 = vmatpush1.msra.mxu0 0.0
    %139 = vmatprep.subr.mxu0 0.0
    %140 = vmatpush1.msra.mxu0 0.0
    %141 = vmatprep.subr.mxu0 0.0
    %142 = vmatpush1.msra.mxu0 0.0
    %143 = vmatprep.subr.mxu0 0.0
    %144 = vmatpush1.msra.mxu0 0.0
    %145 = vmatprep.subr.mxu0 0.0
    %146 = vmatpush1.msra.mxu0 0.0
    %147 = vmatprep.subr.mxu0 0.0
    %148 = vmatpush1.msra.mxu0 0.0
    %149 = vmatprep.subr.mxu0 0.0
    %150 = vmatpush1.msra.mxu0 0.0
    %151 = vmatprep.subr.mxu0 0.0
    %152 = vmatpush1.msra.mxu0 0.0
    %153 = vmatprep.subr.mxu0 0.0
    %154 = vmatpush1.msra.mxu0 0.0
    %155 = vmatprep.subr.mxu0 0.0
    %156 = vmatpush1.msra.mxu0 0.0
    %157 = vmatprep.subr.mxu0 0.0
    %158 = vmatpush1.msra.mxu0 0.0
    %159 = vmatprep.subr.mxu0 0.0
    %160 = vmatpush1.msra.mxu0 0.0
    %161 = vmatprep.subr.mxu0 0.0
    %162 = vmatpush1.msra.mxu0 0.0
    %163 = vmatprep.subr.mxu0 0.0
    %164 = vmatpush1.msra.mxu0 0.0
    %165 = vmatprep.mubr.f32.mxu0 0.0
    %166 = vmatmul.mubr.f32.gmra.mrb[0].mxu0 %v99
    %v167 = vpop.f32.mrb[0].mxu0
    %v168 = vadd.f32 %v85, %v167
    %v169 = vpop.f32.mrb[0].mxu0
    %v170 = vadd.f32 %v89, %v169
    %171 = vdwg.mxu0
    %172 = vmatprep.subr.mxu0 0.0
    %173 = vmatpush1.msra.mxu0 %v76
    %174 = vmatprep.subr.mxu0 0.0
    %175 = vmatpush1.msra.mxu0 %v79
    %176 = vmatprep.subr.mxu0 0.0
    %177 = vmatpush1.msra.mxu0 0.0
    %178 = vmatprep.subr.mxu0 0.0
    %179 = vmatpush1.msra.mxu0 0.0
    %180 = vmatprep.subr.mxu0 0.0
    %181 = vmatpush1.msra.mxu0 0.0
    %182 = vmatprep.subr.mxu0 0.0
    %183 = vmatpush1.msra.mxu0 0.0
    %184 = vmatprep.subr.mxu0 0.0
    %185 = vmatpush1.msra.mxu0 0.0
    %186 = vmatprep.subr.mxu0 0.0
    %187 = vmatpush1.msra.mxu0 0.0
    %188 = vmatprep.subr.mxu0 0.0
    %189 = vmatpush1.msra.mxu0 0.0
    %190 = vmatprep.subr.mxu0 0.0
    %191 = vmatpush1.msra.mxu0 0.0
    %192 = vmatprep.subr.mxu0 0.0
    %193 = vmatpush1.msra.mxu0 0.0
    %194 = vmatprep.subr.mxu0 0.0
    %195 = vmatpush1.msra.mxu0 0.0
    %196 = vmatprep.subr.mxu0 0.0
    %197 = vmatpush1.msra.mxu0 0.0
    %198 = vmatprep.subr.mxu0 0.0
    %199 = vmatpush1.msra.mxu0 0.0
    %200 = vmatprep.subr.mxu0 0.0
    %201 = vmatpush1.msra.mxu0 0.0
    %202 = vmatprep.subr.mxu0 0.0
    %203 = vmatpush1.msra.mxu0 0.0
    %204 = vmatprep.subr.mxu0 0.0
    %205 = vmatpush1.msra.mxu0 0.0
    %206 = vmatprep.subr.mxu0 0.0
    %207 = vmatpush1.msra.mxu0 0.0
    %208 = vmatprep.subr.mxu0 0.0
    %209 = vmatpush1.msra.mxu0 0.0
    %210 = vmatprep.subr.mxu0 0.0
    %211 = vmatpush1.msra.mxu0 0.0
    %212 = vmatprep.subr.mxu0 0.0
    %213 = vmatpush1.msra.mxu0 0.0
    %214 = vmatprep.subr.mxu0 0.0
    %215 = vmatpush1.msra.mxu0 0.0
    %216 = vmatprep.subr.mxu0 0.0
    %217 = vmatpush1.msra.mxu0 0.0
    %218 = vmatprep.subr.mxu0 0.0
    %219 = vmatpush1.msra.mxu0 0.0
    %220 = vmatprep.subr.mxu0 0.0
    %221 = vmatpush1.msra.mxu0 0.0
    %222 = vmatprep.subr.mxu0 0.0
    %223 = vmatpush1.msra.mxu0 0.0
    %224 = vmatprep.subr.mxu0 0.0
    %225 = vmatpush1.msra.mxu0 0.0
    %226 = vmatprep.subr.mxu0 0.0
    %227 = vmatpush1.msra.mxu0 0.0
    %228 = vmatprep.subr.mxu0 0.0
    %229 = vmatpush1.msra.mxu0 0.0
    %230 = vmatprep.subr.mxu0 0.0
    %231 = vmatpush1.msra.mxu0 0.0
    %232 = vmatprep.subr.mxu0 0.0
    %233 = vmatpush1.msra.mxu0 0.0
    %234 = vmatprep.subr.mxu0 0.0
    %235 = vmatpush1.msra.mxu0 0.0
    %236 = vmatprep.mubr.f32.mxu0 0.0
    %237 = vmatmul.mubr.f32.gmra.mrb[0].mxu0 %v99
    %v238 = vpop.f32.mrb[0].mxu0
    %v239 = vadd.f32 %v93, %v238
    %v240 = vpop.f32.mrb[0].mxu0
    %241 = vdwg.mxu0
    %v242 = vld [vmem:[#allocation8] sm:$0xff]
    %v243 = vld [vmem:[#allocation8 + $0x8] sm:$0xff]
    %v244 = vld [vmem:[#allocation8 + $0x18] sm:$0xff]
    %v245 = vld [vmem:[#allocation8 + $0x20] sm:$0xff]
    %v246 = vld [vmem:[#allocation8 + $0x30] sm:$0xff]
    %v247 = vld [vmem:[#allocation8 + $0x38] sm:$0xff]
    %v248 = vld [vmem:[#allocation8 + $0x48] sm:$0xff]
    %v249 = vld [vmem:[#allocation8 + $0x50] sm:$0xff]
    %v250 = vld [vmem:[#allocation8 + $0x60] sm:$0xff]
    %v251 = vld [vmem:[#allocation8 + $0x68] sm:$0xff]
    %v252 = vld [vmem:[#allocation8 + $0x78] sm:$0xff]
    %v253 = vld [vmem:[#allocation8 + $0x80] sm:$0xff]
    %v254 = vld [vmem:[#allocation8 + $0x90] sm:$0xff]
    %v255 = vld [vmem:[#allocation8 + $0x98] sm:$0xff]
    %v256 = vld [vmem:[#allocation8 + $0xa8] sm:$0xff]
    %v257 = vld [vmem:[#allocation8 + $0xb0] sm:$0xff]
    %v258 = vld [vmem:[#allocation8 + $0xc0] sm:$0xff]
    %v259 = vld [vmem:[#allocation8 + $0xc8] sm:$0xff]
    %v260 = vld [vmem:[#allocation8 + $0xd8] sm:$0xff]
    %v261 = vld [vmem:[#allocation8 + $0xe0] sm:$0xff]
    %v262 = vld [vmem:[#allocation8 + $0xf0] sm:$0xff]
    %v263 = vld [vmem:[#allocation8 + $0xf8] sm:$0xff]
    %v264 = vld [vmem:[#allocation8 + $0x108] sm:$0xff]
    %v265 = vld [vmem:[#allocation8 + $0x110] sm:$0xff]
    %v266 = vld [vmem:[#allocation8 + $0x120] sm:$0xff]
    %v267 = vld [vmem:[#allocation8 + $0x128] sm:$0xff]
    %v268 = vld [vmem:[#allocation8 + $0x138] sm:$0xff]
    %v269 = vld [vmem:[#allocation8 + $0x140] sm:$0xff]
    %v270 = vld [vmem:[#allocation8 + $0x150] sm:$0xff]
    %v271 = vld [vmem:[#allocation8 + $0x158] sm:$0xff]
    %v272 = vld [vmem:[#allocation8 + $0x168] sm:$0xff]
    %v273 = vld [vmem:[#allocation8 + $0x170] sm:$0xff]
    %274 = vmatprep.subr.mxu0 %v243
    %275 = vmatpush1.msra.mxu0 %v242
    %276 = vmatprep.subr.mxu0 %v245
    %277 = vmatpush1.msra.mxu0 %v244
    %278 = vmatprep.subr.mxu0 %v247
    %279 = vmatpush1.msra.mxu0 %v246
    %280 = vmatprep.subr.mxu0 %v249
    %281 = vmatpush1.msra.mxu0 %v248
    %282 = vmatprep.subr.mxu0 %v251
    %283 = vmatpush1.msra.mxu0 %v250
    %284 = vmatprep.subr.mxu0 %v253
    %285 = vmatpush1.msra.mxu0 %v252
    %286 = vmatprep.subr.mxu0 %v255
    %287 = vmatpush1.msra.mxu0 %v254
    %288 = vmatprep.subr.mxu0 %v257
    %289 = vmatpush1.msra.mxu0 %v256
    %290 = vmatprep.subr.mxu0 %v259
    %291 = vmatpush1.msra.mxu0 %v258
    %292 = vmatprep.subr.mxu0 %v261
    %293 = vmatpush1.msra.mxu0 %v260
    %294 = vmatprep.subr.mxu0 %v263
    %295 = vmatpush1.msra.mxu0 %v262
    %296 = vmatprep.subr.mxu0 %v265
    %297 = vmatpush1.msra.mxu0 %v264
    %298 = vmatprep.subr.mxu0 %v267
    %299 = vmatpush1.msra.mxu0 %v266
    %300 = vmatprep.subr.mxu0 %v269
    %301 = vmatpush1.msra.mxu0 %v268
    %302 = vmatprep.subr.mxu0 %v271
    %303 = vmatpush1.msra.mxu0 %v270
    %304 = vmatprep.subr.mxu0 %v273
    %305 = vmatpush1.msra.mxu0 %v272
    %306 = vmatprep.subr.mxu0 0.0
    %307 = vmatpush1.msra.mxu0 0.0
    %308 = vmatprep.subr.mxu0 0.0
    %309 = vmatpush1.msra.mxu0 0.0
    %310 = vmatprep.subr.mxu0 0.0
    %311 = vmatpush1.msra.mxu0 0.0
    %312 = vmatprep.subr.mxu0 0.0
    %313 = vmatpush1.msra.mxu0 0.0
    %314 = vmatprep.subr.mxu0 0.0
    %315 = vmatpush1.msra.mxu0 0.0
    %316 = vmatprep.subr.mxu0 0.0
    %317 = vmatpush1.msra.mxu0 0.0
    %318 = vmatprep.subr.mxu0 0.0
    %319 = vmatpush1.msra.mxu0 0.0
    %320 = vmatprep.subr.mxu0 0.0
    %321 = vmatpush1.msra.mxu0 0.0
    %322 = vmatprep.subr.mxu0 0.0
    %323 = vmatpush1.msra.mxu0 0.0
    %324 = vmatprep.subr.mxu0 0.0
    %325 = vmatpush1.msra.mxu0 0.0
    %326 = vmatprep.subr.mxu0 0.0
    %327 = vmatpush1.msra.mxu0 0.0
    %328 = vmatprep.subr.mxu0 0.0
    %329 = vmatpush1.msra.mxu0 0.0
    %330 = vmatprep.subr.mxu0 0.0
    %331 = vmatpush1.msra.mxu0 0.0
    %332 = vmatprep.subr.mxu0 0.0
    %333 = vmatpush1.msra.mxu0 0.0
    %334 = vmatprep.subr.mxu0 0.0
    %335 = vmatpush1.msra.mxu0 0.0
    %336 = vmatprep.subr.mxu0 0.0
    %337 = vmatpush1.msra.mxu0 0.0
    %338 = vmatprep.mubr.f32.mxu0 0.0
    %339 = vmatmul.mubr.f32.gmra.mrb[0].mxu0 %v73
    %v340 = vpop.f32.mrb[0].mxu0
    %v341 = vadd.f32 0.0, %v340
    %v342 = vpop.f32.mrb[0].mxu0
    %v343 = vadd.f32 0.0, %v342
    %344 = vdwg.mxu0
    %v345 = vadd.f32 %v168, %v341
    %v346 = vxor.u32 %v345, 2147483648
    %v347 = vmul.f32 %v346, 1.442695
    %v348 = vpow.pop %v347
    %v349 = vadd.f32 %v348, 1.0
    %v350 = vrcp.pop %v349
    %v351 = vmul.f32 1.0, %v350
    %v352 = vadd.f32 %v170, %v343
    %v353 = vxor.u32 %v352, 2147483648
    %v354 = vmul.f32 %v353, 1.442695
    %v355 = vpow.pop %v354
    %v356 = vadd.f32 %v355, 1.0
    %v357 = vrcp.pop %v356
    %v358 = vmul.f32 1.0, %v357
    %v359 = vmul.f32 %v358, %v73
    %v360 = vld [vmem:[#allocation8 + $0x10] sm:$0xff]
    %v361 = vld [vmem:[#allocation8 + $0x28] sm:$0xff]
    %v362 = vld [vmem:[#allocation8 + $0x40] sm:$0xff]
    %v363 = vld [vmem:[#allocation8 + $0x58] sm:$0xff]
    %v364 = vld [vmem:[#allocation8 + $0x70] sm:$0xff]
    %v365 = vld [vmem:[#allocation8 + $0x88] sm:$0xff]
    %v366 = vld [vmem:[#allocation8 + $0xa0] sm:$0xff]
    %v367 = vld [vmem:[#allocation8 + $0xb8] sm:$0xff]
    %v368 = vld [vmem:[#allocation8 + $0xd0] sm:$0xff]
    %v369 = vld [vmem:[#allocation8 + $0xe8] sm:$0xff]
    %v370 = vld [vmem:[#allocation8 + $0x100] sm:$0xff]
    %v371 = vld [vmem:[#allocation8 + $0x118] sm:$0xff]
    %v372 = vld [vmem:[#allocation8 + $0x130] sm:$0xff]
    %v373 = vld [vmem:[#allocation8 + $0x148] sm:$0xff]
    %v374 = vld [vmem:[#allocation8 + $0x160] sm:$0xff]
    %v375 = vld [vmem:[#allocation8 + $0x178] sm:$0xff]
    %376 = vmatprep.subr.mxu0 0.0
    %377 = vmatpush1.msra.mxu0 %v360
    %378 = vmatprep.subr.mxu0 0.0
    %379 = vmatpush1.msra.mxu0 %v361
    %380 = vmatprep.subr.mxu0 0.0
    %381 = vmatpush1.msra.mxu0 %v362
    %382 = vmatprep.subr.mxu0 0.0
    %383 = vmatpush1.msra.mxu0 %v363
    %384 = vmatprep.subr.mxu0 0.0
    %385 = vmatpush1.msra.mxu0 %v364
    %386 = vmatprep.subr.mxu0 0.0
    %387 = vmatpush1.msra.mxu0 %v365
    %388 = vmatprep.subr.mxu0 0.0
    %389 = vmatpush1.msra.mxu0 %v366
    %390 = vmatprep.subr.mxu0 0.0
    %391 = vmatpush1.msra.mxu0 %v367
    %392 = vmatprep.subr.mxu0 0.0
    %393 = vmatpush1.msra.mxu0 %v368
    %394 = vmatprep.subr.mxu0 0.0
    %395 = vmatpush1.msra.mxu0 %v369
    %396 = vmatprep.subr.mxu0 0.0
    %397 = vmatpush1.msra.mxu0 %v370
    %398 = vmatprep.subr.mxu0 0.0
    %399 = vmatpush1.msra.mxu0 %v371
    %400 = vmatprep.subr.mxu0 0.0
    %401 = vmatpush1.msra.mxu0 %v372
    %402 = vmatprep.subr.mxu0 0.0
    %403 = vmatpush1.msra.mxu0 %v373
    %404 = vmatprep.subr.mxu0 0.0
    %405 = vmatpush1.msra.mxu0 %v374
    %406 = vmatprep.subr.mxu0 0.0
    %407 = vmatpush1.msra.mxu0 %v375
    %408 = vmatprep.subr.mxu0 0.0
    %409 = vmatpush1.msra.mxu0 0.0
    %410 = vmatprep.subr.mxu0 0.0
    %411 = vmatpush1.msra.mxu0 0.0
    %412 = vmatprep.subr.mxu0 0.0
    %413 = vmatpush1.msra.mxu0 0.0
    %414 = vmatprep.subr.mxu0 0.0
    %415 = vmatpush1.msra.mxu0 0.0
    %416 = vmatprep.subr.mxu0 0.0
    %417 = vmatpush1.msra.mxu0 0.0
    %418 = vmatprep.subr.mxu0 0.0
    %419 = vmatpush1.msra.mxu0 0.0
    %420 = vmatprep.subr.mxu0 0.0
    %421 = vmatpush1.msra.mxu0 0.0
    %422 = vmatprep.subr.mxu0 0.0
    %423 = vmatpush1.msra.mxu0 0.0
    %424 = vmatprep.subr.mxu0 0.0
    %425 = vmatpush1.msra.mxu0 0.0
    %426 = vmatprep.subr.mxu0 0.0
    %427 = vmatpush1.msra.mxu0 0.0
    %428 = vmatprep.subr.mxu0 0.0
    %429 = vmatpush1.msra.mxu0 0.0
    %430 = vmatprep.subr.mxu0 0.0
    %431 = vmatpush1.msra.mxu0 0.0
    %432 = vmatprep.subr.mxu0 0.0
    %433 = vmatpush1.msra.mxu0 0.0
    %434 = vmatprep.subr.mxu0 0.0
    %435 = vmatpush1.msra.mxu0 0.0
    %436 = vmatprep.subr.mxu0 0.0
    %437 = vmatpush1.msra.mxu0 0.0
    %438 = vmatprep.subr.mxu0 0.0
    %439 = vmatpush1.msra.mxu0 0.0
    %440 = vmatprep.mubr.f32.mxu0 0.0
    %441 = vmatmul.mubr.f32.gmra.mrb[0].mxu0 %v359
    %v442 = vpop.f32.mrb[0].mxu0
    %v443 = vadd.f32 0.0, %v442
    %v444 = vpop.f32.mrb[0].mxu0
    %445 = vdwg.mxu0
    %v446 = vadd.f32 %v239, %v443
    %v447 = vtanh.pop %v446
    %v448 = vsub.f32 %v447, %v73
    %v449 = vmul.f32 %v351, %v448
    %v450 = vadd.f32 %v73, %v449
    %451 = vst [vmem:[#allocation10] sm:$0xff] %v450
    // Predicated region
    $region38: #{tpu_custom_call.1} parent=1 // pred_check
      _
    $region39: #{tpu_custom_call.1} parent=1 // pred_check_branch
      %453 = sbr.rel (0) target = $region41
    $region40: #{tpu_custom_call.1} parent=1 // pred_region
      %s455 = ssub.s32 128, 128
      %456 = vsyncadd [#allocation4], %s455
      %s458 = sshll.u32 [#allocation10], 4
      %s459 = int_to_ptr.vmem [resolvable:$true] %s458
      %461 = dma.vmem_to_hbm [thread:$0]  %s459, 128, %s5, [#allocation4]
    $region41: #{tpu_custom_call.1} parent=1 // pred_fallthru
      _
    // Predicated region
    $region42: #{tpu_custom_call.1} parent=1 // pred_check
      _
    $region43: #{tpu_custom_call.1} parent=1 // pred_check_branch
      %463 = sbr.rel (0) target = $region45
    $region44: #{tpu_custom_call.1} parent=1 // pred_region
      %464 = dma.done [#allocation4], 128
    $region45: #{tpu_custom_call.1} parent=1 // pred_fallthru
      _
    %465 = vsyncpa [#allocation3], 1
    %466 = vsyncpa [#allocation6], 1
    %467 = vsyncpa [#allocation9], 1
    %468 = vsyncpa [#allocation4], 1

</llo_original>
